<compile_context>
chip_gen: v5e
topology: v5e:2x2
jax: 0.10.0
libtpu: 0.0.40
codegen_flags: <defaults>
</compile_context>

<pallas_src>
from functools import partial

import jax
import jax.numpy as jnp
from jax import lax
from jax.experimental import pallas as pl
from jax.experimental.pallas import tpu as pltpu


def _round_up(x, m):
    return ((x + m - 1) // m) * m


def _largest_divisor_le(n, cap):
    best = 1
    for k in range(1, n + 1):
        if k > cap:
            break
        if n % k == 0:
            best = k
    return best


def _ca_kernel(x_ref, w1t_ref, w2t_ref, o_ref, sum_ref, max_ref, *,
               s_true, sb, lacc, subs, n_s, tail):
    """One grid step = (batch-block bb, spatial block s).

    x_ref   : (Bb, C, Sb)    lane-dense spatial tile (native dtype)
    w1t_ref : (C, Cr)        fc1 weight, transposed
    w2t_ref : (Cr, C)        fc2 weight, transposed
    o_ref   : (Bb, 1, C)     sigmoid channel attention, channels on lanes
    sum_ref : (Bb, C, lacc)  f32 running partial sums   (VMEM scratch)
    max_ref : (Bb, C, lacc)  f32 running partial maxes  (VMEM scratch)
    """
    s = pl.program_id(1)
    bb, c, _ = sum_ref.shape
    span = subs * lacc
    last = n_s - 1

    @pl.when(s == 0)
    def _init():
        sum_ref[...] = jnp.zeros_like(sum_ref)
        max_ref[...] = jnp.full_like(max_ref, -jnp.inf)

    def accumulate(limit):
        # limit: static number of valid spatial elements in this block, or None (= sb).
        nk = sb // span if limit is None else -(-limit // span)
        if limit is not None:
            lane = lax.broadcasted_iota(jnp.int32, (bb, c, lacc), 2)

        def body(k, carry):
            s_acc, m_acc = carry
            for j in range(subs):                      # static unroll: fewer acc RMWs
                off = pl.multiple_of(k * span + j * lacc, lacc)
                chunk = x_ref[:, :, pl.ds(off, lacc)].astype(jnp.float32)
                if limit is None:
                    s_acc = s_acc + chunk
                    m_acc = jnp.maximum(m_acc, chunk)
                else:
                    valid = (off + lane) < limit
                    s_acc = s_acc + jnp.where(valid, chunk, 0.0)
                    m_acc = jnp.maximum(m_acc, jnp.where(valid, chunk, -jnp.inf))
            return s_acc, m_acc

        s_acc, m_acc = lax.fori_loop(0, nk, body, (sum_ref[...], max_ref[...]))
        sum_ref[...] = s_acc
        max_ref[...] = m_acc

    if tail == sb:
        # Every spatial block is fully in-bounds: single unmasked path for all steps.
        accumulate(None)
    else:
        if n_s > 1:
            @pl.when(s < last)
            def _full_blocks():
                accumulate(None)

        @pl.when(s == last)
        def _tail_block():
            accumulate(tail)   # mask OOB lanes: 0 for the sum, -inf for the max

    @pl.when(s == last)
    def _finalize():
        inv_n = jnp.float32(1.0 / float(s_true))
        avg = jnp.sum(sum_ref[...], axis=-1) * inv_n            # (Bb, C) channels on lanes
        mx = jnp.max(max_ref[...], axis=-1)                     # (Bb, C)
        pooled = jnp.concatenate([avg, mx], axis=0)             # (2*Bb, C)
        w1t = w1t_ref[...].astype(jnp.float32)                  # (C, Cr)
        w2t = w2t_ref[...].astype(jnp.float32)                  # (Cr, C)
        h = jnp.maximum(
            jnp.dot(pooled, w1t, preferred_element_type=jnp.float32), 0.0)   # (2*Bb, Cr)
        o2 = jnp.dot(h, w2t, preferred_element_type=jnp.float32)             # (2*Bb, C)
        att = jax.nn.sigmoid(o2[:bb, :] + o2[bb:, :])                        # (Bb, C)
        o_ref[:, 0, :] = att.astype(o_ref.dtype)                # lane-dense store


def channel_attention(x, fc1_w, fc2_w, *, max_block_bytes=None):
    """x: (B, C, D, H, W); fc1_w: (C//r, C, 1, 1, 1); fc2_w: (C, C//r, 1, 1, 1).
    Returns sigmoid channel-attention weights of shape (B, C, 1, 1, 1),
    matching the PyTorch ChannelAttention module."""
    B, C, D, H, W = x.shape
    Cr = fc1_w.shape[0]
    w1t = fc1_w.reshape(Cr, C).T               # (C, Cr)  pre-transposed: channels on lanes
    w2t = fc2_w.reshape(C, Cr).T               # (Cr, C)

    S = D * H * W
    x3 = x.reshape(B, C, S)                    # free reshape: no transpose, no pad
    itemsize = x.dtype.itemsize

    # --- generation-aware budgets -------------------------------------------------
    try:
        vmem_cap = int(pltpu.get_tpu_info().vmem_capacity_bytes)
    except Exception:                           # pragma: no cover - conservative fallback
        vmem_cap = 64 << 20                     # v7x per-TC VMEM
    if max_block_bytes is None:
        # ~12 MiB tiles on 128 MiB VMEM parts (v5e/v6e), ~10 MiB on v7x (64 MiB VMEM).
        max_block_bytes = max(1 << 20, min(12 << 20, vmem_cap // 6))

    # --- tiling -------------------------------------------------------------------
    # Lane-dense accumulator width (kept small for very wide channel counts).
    lacc = min(512 if C <= 1024 else 128, _round_up(S, 128))
    s_pad = _round_up(S, lacc)

    # Spatial block: multiple of the accumulator width, within the per-step budget.
    sb_cap = max(lacc, (max_block_bytes // max(1, C * itemsize)) // lacc * lacc)
    sb = min(s_pad, sb_cap)
    n_s = -(-S // sb)                           # cdiv over the *true* extent
    tail = S - (n_s - 1) * sb                   # valid elements in the last block

    # Fold several batch rows into one grid step when the spatial extent fits a block.
    if n_s == 1:
        bb_cap = max(1, max_block_bytes // max(1, C * sb * itemsize))
        bb = _largest_divisor_le(B, bb_cap)
    else:
        bb = 1
    n_b = B // bb

    # Static inner unroll (sub-chunks per fori iteration) to cut accumulator RMW traffic.
    subs = 1
    for cand in (4, 3, 2):
        if (sb // lacc) % cand == 0:
            subs = cand
            break

    tile_bytes = bb * C * sb * itemsize
    vmem_limit = int(min(int(vmem_cap * 0.9),
                         max(32 << 20, 2 * tile_bytes + (16 << 20))))

    kern = partial(_ca_kernel, s_true=S, sb=sb, lacc=lacc, subs=subs, n_s=n_s, tail=tail)

    out = pl.pallas_call(
        kern,
        out_shape=jax.ShapeDtypeStruct((B, 1, C), x.dtype),
        grid_spec=pltpu.PrefetchScalarGridSpec(
            num_scalar_prefetch=0,
            grid=(n_b, n_s),
            in_specs=[
                pl.BlockSpec((bb, C, sb), lambda b, s: (b, 0, s)),
                pl.BlockSpec((C, Cr), lambda b, s: (0, 0)),
                pl.BlockSpec((Cr, C), lambda b, s: (0, 0)),
            ],
            out_specs=pl.BlockSpec((bb, 1, C), lambda b, s: (b, 0, 0)),
            scratch_shapes=[
                pltpu.VMEM((bb, C, lacc), jnp.float32),   # running sum
                pltpu.VMEM((bb, C, lacc), jnp.float32),   # running max
            ],
        ),
        compiler_params=pltpu.CompilerParams(
            dimension_semantics=("parallel", "arbitrary"),
            vmem_limit_bytes=vmem_limit),
    )(x3, w1t, w2t)

    # (B, 1, C) -> (B, C, 1, 1, 1) is a free reshape (b-major, c-minor in both).
    return out.reshape(B, C, 1, 1, 1)


def reference(x, w1, w2):
    """Pure-JAX reference, same math as the PyTorch module."""
    avg = jnp.mean(x, axis=(2, 3, 4))              # (B, C)
    mx = jnp.max(x, axis=(2, 3, 4))                # (B, C)

    def mlp(v):
        h = jnp.maximum(v @ w1.T, 0.0)             # (B, Cr)
        return h @ w2.T                            # (B, C)

    out = jax.nn.sigmoid(mlp(avg) + mlp(mx))
    return out.reshape(x.shape[0], x.shape[1], 1, 1, 1)


if __name__ == "__main__":
    key = jax.random.PRNGKey(0)

    def run_case(B, C, ratio, D, H, W, max_block_bytes, k):
        Cr = C // ratio
        kx, k1, k2 = jax.random.split(k, 3)
        x = jax.random.normal(kx, (B, C, D, H, W), dtype=jnp.float32)
        b1 = 1.0 / jnp.sqrt(jnp.float32(C))
        fc1_w = jax.random.uniform(k1, (Cr, C, 1, 1, 1), jnp.float32, minval=-b1, maxval=b1)
        b2 = 1.0 / jnp.sqrt(jnp.float32(Cr))
        fc2_w = jax.random.uniform(k2, (C, Cr, 1, 1, 1), jnp.float32, minval=-b2, maxval=b2)

        out = jax.block_until_ready(
            channel_attention(x, fc1_w, fc2_w, max_block_bytes=max_block_bytes))
        ref = jax.block_until_ready(
            reference(x, fc1_w.reshape(Cr, C), fc2_w.reshape(C, Cr)))
        assert out.shape == (B, C, 1, 1, 1), out.shape
        assert jnp.allclose(out, ref, atol=1e-5, rtol=1e-5), \
            float(jnp.max(jnp.abs(out - ref)))

    ka, kb, kc = jax.random.split(key, 3)
    # 1) Multi-block spatial reduction (tiny forced budget), S an exact block multiple.
    run_case(2, 12, 3, 16, 16, 16, 64 * 1024, ka)
    # 2) Awkward spatial extent (S=343): single padded block, in-kernel tail masking,
    #    and batch folding (both samples in one grid step).
    run_case(2, 12, 3, 7, 7, 7, None, kb)
    # 3) Multi-block with a ragged tail (S=3840, 1024-wide blocks -> masked last block).
    run_case(2, 12, 3, 16, 16, 15, 64 * 1024, kc)

    print("KERNEL_OK")
</pallas_src>

<mosaic_0001>
module attributes {stable_mosaic.version = 11 : i64} {
  func.func @_ca_kernel(%arg0: i32, %arg1: i32, %arg2: memref<1x12x1024xf32, #tpu.memory_space<vmem>>, %arg3: memref<12x4xf32, #tpu.memory_space<vmem>>, %arg4: memref<4x12xf32, #tpu.memory_space<vmem>>, %arg5: memref<1x1x12xf32, #tpu.memory_space<vmem>>, %arg6: memref<1x12x512xf32, #tpu.memory_space<vmem>>, %arg7: memref<1x12x512xf32, #tpu.memory_space<vmem>>) attributes {dimension_semantics = [#tpu.dimension_semantics<parallel>, #tpu.dimension_semantics<arbitrary>], iteration_bounds = array<i64: 2, 4>, scalar_prefetch = 0 : i64, scratch_operands = 2 : i64, tpu.core_type = #tpu.core_type<tc>, window_params = [{transform_indices = @transform_0, window_bounds = array<i64: 1, 12, 1024>}, {pipeline_mode = #tpu.pipeline_mode<synchronous>, transform_indices = @transform_1, window_bounds = array<i64: 12, 4>}, {pipeline_mode = #tpu.pipeline_mode<synchronous>, transform_indices = @transform_2, window_bounds = array<i64: 4, 12>}, {transform_indices = @transform_3, window_bounds = array<i64: 1, 1, 12>}]} {
    %c0_i32 = arith.constant 0 : i32
    %0 = arith.cmpi eq, %arg1, %c0_i32 : i32
    %1 = arith.extui %0 : i1 to i32
    %c0_i32_0 = arith.constant 0 : i32
    %2 = arith.cmpi ne, %1, %c0_i32_0 : i32
    scf.if %2 {
      %cst = arith.constant 0.000000e+00 : f32
      %24 = vector.broadcast %cst : f32 to vector<1x12x512xf32>
      %c0_20 = arith.constant 0 : index
      %c0_21 = arith.constant 0 : index
      %c0_22 = arith.constant 0 : index
      %25 = vector.load %arg6[%c0_20, %c0_21, %c0_22] : memref<1x12x512xf32, #tpu.memory_space<vmem>>, vector<1x12x512xf32>
      tpu.vector_store %arg6[%c0_20, %c0_21, %c0_22], %24 {strides = array<i32>} : memref<1x12x512xf32, #tpu.memory_space<vmem>>, vector<1x12x512xf32>,
      %cst_23 = arith.constant 0xFF800000 : f32
      %26 = vector.broadcast %cst_23 : f32 to vector<1x12x512xf32>
      %c0_24 = arith.constant 0 : index
      %c0_25 = arith.constant 0 : index
      %c0_26 = arith.constant 0 : index
      %27 = vector.load %arg7[%c0_24, %c0_25, %c0_26] : memref<1x12x512xf32, #tpu.memory_space<vmem>>, vector<1x12x512xf32>
      tpu.vector_store %arg7[%c0_24, %c0_25, %c0_26], %26 {strides = array<i32>} : memref<1x12x512xf32, #tpu.memory_space<vmem>>, vector<1x12x512xf32>,
    } else {
    }
    %c0 = arith.constant 0 : index
    %c0_1 = arith.constant 0 : index
    %c0_2 = arith.constant 0 : index
    %3 = vector.load %arg6[%c0, %c0_1, %c0_2] : memref<1x12x512xf32, #tpu.memory_space<vmem>>, vector<1x12x512xf32>
    %c0_3 = arith.constant 0 : index
    %c0_4 = arith.constant 0 : index
    %c0_5 = arith.constant 0 : index
    %4 = vector.load %arg7[%c0_3, %c0_4, %c0_5] : memref<1x12x512xf32, #tpu.memory_space<vmem>>, vector<1x12x512xf32>
    %c0_i32_6 = arith.constant 0 : i32
    %c1024_i32 = arith.constant 1024 : i32
    %5 = arith.muli %c0_i32_6, %c1024_i32 : i32
    %c0_i32_7 = arith.constant 0 : i32
    %6 = arith.addi %5, %c0_i32_7 : i32
    %7 = tpu.assume_multiple %6, 512 : i32
    %c0_8 = arith.constant 0 : index
    %c0_9 = arith.constant 0 : index
    %8 = arith.index_cast %7 : i32 to index
    %9 = vector.load %arg2[%c0_8, %c0_9, %8] : memref<1x12x1024xf32, #tpu.memory_space<vmem>>, vector<1x12x512xf32>
    %10 = arith.addf %3, %9 : vector<1x12x512xf32>
    %11 = arith.maximumf %4, %9 : vector<1x12x512xf32>
    %c1024_i32_10 = arith.constant 1024 : i32
    %12 = arith.muli %c0_i32_6, %c1024_i32_10 : i32
    %c512_i32 = arith.constant 512 : i32
    %13 = arith.addi %12, %c512_i32 : i32
    %14 = tpu.assume_multiple %13, 512 : i32
    %c0_11 = arith.constant 0 : index
    %c0_12 = arith.constant 0 : index
    %15 = arith.index_cast %14 : i32 to index
    %16 = vector.load %arg2[%c0_11, %c0_12, %15] : memref<1x12x1024xf32, #tpu.memory_space<vmem>>, vector<1x12x512xf32>
    %17 = arith.addf %10, %16 : vector<1x12x512xf32>
    %18 = arith.maximumf %11, %16 : vector<1x12x512xf32>
    %c1_i32 = arith.constant 1 : i32
    %c0_13 = arith.constant 0 : index
    %c0_14 = arith.constant 0 : index
    %c0_15 = arith.constant 0 : index
    %19 = vector.load %arg6[%c0_13, %c0_14, %c0_15] : memref<1x12x512xf32, #tpu.memory_space<vmem>>, vector<1x12x512xf32>
    tpu.vector_store %arg6[%c0_13, %c0_14, %c0_15], %17 {strides = array<i32>} : memref<1x12x512xf32, #tpu.memory_space<vmem>>, vector<1x12x512xf32>,
    %c0_16 = arith.constant 0 : index
    %c0_17 = arith.constant 0 : index
    %c0_18 = arith.constant 0 : index
    %20 = vector.load %arg7[%c0_16, %c0_17, %c0_18] : memref<1x12x512xf32, #tpu.memory_space<vmem>>, vector<1x12x512xf32>
    tpu.vector_store %arg7[%c0_16, %c0_17, %c0_18], %18 {strides = array<i32>} : memref<1x12x512xf32, #tpu.memory_space<vmem>>, vector<1x12x512xf32>,
    %c3_i32 = arith.constant 3 : i32
    %21 = arith.cmpi eq, %arg1, %c3_i32 : i32
    %22 = arith.extui %21 : i1 to i32
    %c0_i32_19 = arith.constant 0 : i32
    %23 = arith.cmpi ne, %22, %c0_i32_19 : i32
    scf.if %23 {
      %c0_20 = arith.constant 0 : index
      %c0_21 = arith.constant 0 : index
      %c0_22 = arith.constant 0 : index
      %24 = vector.load %arg6[%c0_20, %c0_21, %c0_22] : memref<1x12x512xf32, #tpu.memory_space<vmem>>, vector<1x12x512xf32>
      %cst = arith.constant dense<0.000000e+00> : vector<1x12xf32>
      %25 = vector.multi_reduction <add>, %24, %cst [2] : vector<1x12x512xf32> to vector<1x12xf32>
      %cst_23 = arith.constant 2.44140625E-4 : f32
      %26 = vector.broadcast %cst_23 : f32 to vector<1x12xf32>
      %27 = arith.mulf %25, %26 : vector<1x12xf32>
      %c0_24 = arith.constant 0 : index
      %c0_25 = arith.constant 0 : index
      %c0_26 = arith.constant 0 : index
      %28 = vector.load %arg7[%c0_24, %c0_25, %c0_26] : memref<1x12x512xf32, #tpu.memory_space<vmem>>, vector<1x12x512xf32>
      %cst_27 = arith.constant dense<0xFF800000> : vector<1x12xf32>
      %29 = vector.multi_reduction <maximumf>, %28, %cst_27 [2] : vector<1x12x512xf32> to vector<1x12xf32>
      %30 = tpu.concatenate %27, %29 in 0 : vector<1x12xf32>, vector<1x12xf32> -> vector<2x12xf32>
      %c0_28 = arith.constant 0 : index
      %c0_29 = arith.constant 0 : index
      %31 = vector.load %arg3[%c0_28, %c0_29] : memref<12x4xf32, #tpu.memory_space<vmem>>, vector<12x4xf32>
      %c0_30 = arith.constant 0 : index
      %c0_31 = arith.constant 0 : index
      %32 = vector.load %arg4[%c0_30, %c0_31] : memref<4x12xf32, #tpu.memory_space<vmem>>, vector<4x12xf32>
      %cst_32 = arith.constant dense<0.000000e+00> : vector<2x4xf32>
      %33 = tpu.matmul %30, %31, %cst_32 {dimension_numbers = #tpu.dot_dimension_numbers<[1], [0], [0], [1], [0, 0, 1, 1], [], []>} : vector<2x12xf32>, vector<12x4xf32>, vector<2x4xf32> -> vector<2x4xf32>
      %cst_33 = arith.constant 0.000000e+00 : f32
      %34 = vector.broadcast %cst_33 : f32 to vector<2x4xf32>
      %35 = arith.maximumf %33, %34 : vector<2x4xf32>
      %cst_34 = arith.constant dense<0.000000e+00> : vector<2x12xf32>
      %36 = tpu.matmul %35, %32, %cst_34 {dimension_numbers = #tpu.dot_dimension_numbers<[1], [0], [0], [1], [0, 0, 1, 1], [], []>} : vector<2x4xf32>, vector<4x12xf32>, vector<2x12xf32> -> vector<2x12xf32>
      %37 = vector.extract_strided_slice %36 {offsets = [0, 0], sizes = [1, 12], strides = [1, 1]} : vector<2x12xf32> to vector<1x12xf32>
      %38 = vector.extract_strided_slice %36 {offsets = [1, 0], sizes = [1, 12], strides = [1, 1]} : vector<2x12xf32> to vector<1x12xf32>
      %39 = arith.addf %37, %38 : vector<1x12xf32>
      %40 = arith.negf %39 : vector<1x12xf32>
      %41 = math.exp %40 : vector<1x12xf32>
      %cst_35 = arith.constant 1.000000e+00 : f32
      %42 = vector.broadcast %cst_35 : f32 to vector<1x12xf32>
      %43 = arith.addf %42, %41 : vector<1x12xf32>
      %44 = arith.divf %42, %43 : vector<1x12xf32>
      %c0_36 = arith.constant 0 : index
      %c0_37 = arith.constant 0 : index
      %c0_38 = arith.constant 0 : index
      %45 = vector.load %arg5[%c0_36, %c0_37, %c0_38] : memref<1x1x12xf32, #tpu.memory_space<vmem>>, vector<1x1x12xf32>
      %46 = vector.shape_cast %45 : vector<1x1x12xf32> to vector<1x12xf32>
      %47 = vector.shape_cast %44 : vector<1x12xf32> to vector<1x1x12xf32>
      tpu.vector_store %arg5[%c0_36, %c0_37, %c0_38], %47 {strides = array<i32>} : memref<1x1x12xf32, #tpu.memory_space<vmem>>, vector<1x1x12xf32>,
    } else {
    }
    return
  }
  func.func @transform_0(%arg0: i32, %arg1: i32) -> (i32, i32, i32) {
    %c0_i32 = arith.constant 0 : i32
    %c0_i32_0 = arith.constant 0 : i32
    return %arg0, %c0_i32, %arg1 : i32, i32, i32
  }
  func.func @transform_1(%arg0: i32, %arg1: i32) -> (i32, i32) {
    %c0_i32 = arith.constant 0 : i32
    %c0_i32_0 = arith.constant 0 : i32
    %c0_i32_1 = arith.constant 0 : i32
    return %c0_i32, %c0_i32_0 : i32, i32
  }
  func.func @transform_2(%arg0: i32, %arg1: i32) -> (i32, i32) {
    %c0_i32 = arith.constant 0 : i32
    %c0_i32_0 = arith.constant 0 : i32
    %c0_i32_1 = arith.constant 0 : i32
    return %c0_i32, %c0_i32_0 : i32, i32
  }
  func.func @transform_3(%arg0: i32, %arg1: i32) -> (i32, i32, i32) {
    %c0_i32 = arith.constant 0 : i32
    %c0_i32_0 = arith.constant 0 : i32
    %c0_i32_1 = arith.constant 0 : i32
    return %arg0, %c0_i32, %c0_i32_0 : i32, i32, i32
  }
}

</mosaic_0001>

<llo_original>
// kernel: tpu_custom_call.1
$region0: #{tpu_custom_call.1}
  #allocation0 [shape = 'u32[]', space=smem, size = 0x4, offset = 0x4, fixed_abs, tag = 'smem constant byte address 0x4 - core index']
  #allocation1 [shape = 'u32[72,128]{1,0:T(1,128)}', space=vmem, size = 0x9000, scoped, tag = 'internal scratch']
  #allocation2 [shape = 'f32[1,12,512]{2,1,0:T(8,128)}', space=vmem, size = 0x8000, scoped, tag = 'scratch operand']
  #allocation3 [shape = 'f32[1,12,512]{2,1,0:T(8,128)}', space=vmem, size = 0x8000, scoped, tag = 'scratch operand']
  %s0 = inlined_call_operand.vmem [shape: f32[2,12,4096], index: 0, kind: input, shape index: {}]
  %s1 = inlined_call_operand.vmem [shape: f32[12,4], index: 1, kind: input, shape index: {}]
  %s2 = inlined_call_operand.vmem [shape: f32[4,12], index: 2, kind: input, shape index: {}]
  %s3 = inlined_call_operand.hbm [shape: f32[2,1,12], index: 3, kind: output, shape index: {}]
  %s4 = sld [smem:[#allocation0]]
  $region76: #{tpu_custom_call.1} parent=0
    _
  %s6 = ssub.s32 1, %s4
  %s7 = scalar_select 0, %s6, %s4
  $region1: #{tpu_custom_call.1} parent=0
    #allocation4 [shape = 'u8[131072]{0}', space=vmem, size = 0x20000, scoped, tag = 'input window, operand 0']
    #allocation5 [shape = 'u8[1024]{0}', space=vmem, size = 0x400, scoped, tag = 'output window, operand 0']
    #allocation6 [shape = 's32[2]{0}', space=sflag, size = 0x8, scoped, tag = 'scoped memory for tpu_custom_call.1']
    %8 = vsyncpa [#allocation6], 0
    %s9 = scalar_lea.sflag [#allocation6], 1
    %10 = vsyncpa %s9, 0
    loop: start=0, step=1, limit=10
    $region2: #{tpu_custom_call.1} parent=1 // loop_pre_header
      _
    $region3: #{tpu_custom_call.1} parent=1 // loop_header
      %s12 = sphi 0, %s16
      %p13 = scmp.ge.s32.totalorder %s12, 10
      %s19 = sphi 0, %s31
      %s20 = sphi 0, %s27
      %s21 = sphi 0, %s19
      %s22 = sphi 0, %s20
      %s23 = sphi 0, %s21
      %s24 = sphi 0, %s22
      %s36 = sphi 0, %s38
      %s39 = sphi 0, %s36
      %s40 = sphi 0, %s39
      %s56 = sphi 0, %s40
      %s60 = sphi 0, %s60
      %s62 = sphi 0, %s60
      %s63 = sphi 0, %s62
      %s77 = sphi 0, %s63
      %s81 = sphi 0, %s81
      %s83 = sphi 0, %s81
      %s84 = sphi 0, %s83
      %s98 = sphi 0, %s84
      %s104 = sphi 0, %s106
      %s107 = sphi 0, %s104
      %s108 = sphi 0, %s107
      %s124 = sphi 0, %s108
    $region4: #{tpu_custom_call.1} parent=1 // loop_header_branch
      %15 = sbr.rel (%p13) target = $region8
    $region5: #{tpu_custom_call.1} parent=1 // loop_body
      %s17 = ssub.s32 %s12, 1
      %s18 = ssub.s32 %s12, 2
      %s25 = sadd.s32 1, %s20
      %p26 = scmp.ge.s32.totalorder %s25, 4
      %s27 = scalar_select %p26, 0, %s25
      %s28 = sadd.s32 1, %s19
      %s29 = scalar_select %p26, %s28, %s19
      %p30 = scmp.ge.s32.totalorder %s29, 2
      %s31 = scalar_select %p30, 0, %s29
      %s32 = ssub.s32 %s19, %s31
      %s33 = ssub.s32 %s20, %s27
      %s34 = sor.u32 %s32, %s33
      %p35 = scmp.eq.s32.totalorder %s34, 0
      %s37 = sadd.s32 %s36, 1
      %s38 = scalar_select %p35, %s36, %s37
      %p41 = pneg %p35
      %p42 = scmp.eq.s32.totalorder %s12, 7
      %p43 = por %p41, %p42
      %p44 = scmp.ne.s32.totalorder %s36, %s39
      %p45 = scmp.eq.s32.totalorder %s12, 0
      %p46 = por %p44, %p45
      %p47 = scmp.ne.s32.totalorder %s36, %s39
      %p48 = scmp.eq.s32.totalorder %s17, 7
      %p49 = por %p47, %p48
      %p50 = scmp.ne.s32.totalorder %s39, %s40
      %p51 = scmp.eq.s32.totalorder %s17, 0
      %p52 = por %p50, %p51
      %p53 = scmp.ne.s32.totalorder %s39, %s40
      %p54 = scmp.eq.s32.totalorder %s18, 7
      %p55 = por %p53, %p54
      %p57 = scmp.ne.s32.totalorder %s40, %s56
      %p58 = scmp.eq.s32.totalorder %s18, 0
      %p59 = por %p57, %p58
      %s61 = sadd.s32 %s60, 1
      %p64 = scmp.eq.s32.totalorder %s12, 7
      %p65 = scmp.ne.s32.totalorder %s60, %s62
      %p66 = scmp.eq.s32.totalorder %s12, 0
      %p67 = por %p65, %p66
      %p68 = scmp.ne.s32.totalorder %s60, %s62
      %p69 = scmp.eq.s32.totalorder %s17, 7
      %p70 = por %p68, %p69
      %p71 = scmp.ne.s32.totalorder %s62, %s63
      %p72 = scmp.eq.s32.totalorder %s17, 0
      %p73 = por %p71, %p72
      %p74 = scmp.ne.s32.totalorder %s62, %s63
      %p75 = scmp.eq.s32.totalorder %s18, 7
      %p76 = por %p74, %p75
      %p78 = scmp.ne.s32.totalorder %s63, %s77
      %p79 = scmp.eq.s32.totalorder %s18, 0
      %p80 = por %p78, %p79
      %s82 = sadd.s32 %s81, 1
      %p85 = scmp.eq.s32.totalorder %s12, 7
      %p86 = scmp.ne.s32.totalorder %s81, %s83
      %p87 = scmp.eq.s32.totalorder %s12, 0
      %p88 = por %p86, %p87
      %p89 = scmp.ne.s32.totalorder %s81, %s83
      %p90 = scmp.eq.s32.totalorder %s17, 7
      %p91 = por %p89, %p90
      %p92 = scmp.ne.s32.totalorder %s83, %s84
      %p93 = scmp.eq.s32.totalorder %s17, 0
      %p94 = por %p92, %p93
      %p95 = scmp.ne.s32.totalorder %s83, %s84
      %p96 = scmp.eq.s32.totalorder %s18, 7
      %p97 = por %p95, %p96
      %p99 = scmp.ne.s32.totalorder %s84, %s98
      %p100 = scmp.eq.s32.totalorder %s18, 0
      %p101 = por %p99, %p100
      %s102 = ssub.s32 %s19, %s31
      %p103 = scmp.eq.s32.totalorder %s102, 0
      %s105 = sadd.s32 %s104, 1
      %s106 = scalar_select %p103, %s104, %s105
      %p109 = pneg %p103
      %p110 = scmp.eq.s32.totalorder %s12, 7
      %p111 = por %p109, %p110
      %p112 = scmp.ne.s32.totalorder %s104, %s107
      %p113 = scmp.eq.s32.totalorder %s12, 0
      %p114 = por %p112, %p113
      %p115 = scmp.ne.s32.totalorder %s104, %s107
      %p116 = scmp.eq.s32.totalorder %s17, 7
      %p117 = por %p115, %p116
      %p118 = scmp.ne.s32.totalorder %s107, %s108
      %p119 = scmp.eq.s32.totalorder %s17, 0
      %p120 = por %p118, %p119
      %p121 = scmp.ne.s32.totalorder %s107, %s108
      %p122 = scmp.eq.s32.totalorder %s18, 7
      %p123 = por %p121, %p122
      %p125 = scmp.ne.s32.totalorder %s108, %s124
      %p126 = scmp.eq.s32.totalorder %s18, 0
      %p127 = por %p125, %p126
      %p128 = scmp.le.s32.totalorder 1, %s12
      %p129 = scmp.lt.s32.totalorder %s12, 9
      %p130 = pnand %p128, %p129
      %p131 = pneg %p130
      // Predicated region
      $region9: #{tpu_custom_call.1} parent=5 // pred_check
        _
      $region10: #{tpu_custom_call.1} parent=5 // pred_check_branch
        %133 = sbr.rel (%p130) target = $region12
      $region11: #{tpu_custom_call.1} parent=5 // pred_region
        %s134 = ssub.s32 %s12, 1
        // Predicated region
        $region13: #{tpu_custom_call.1} parent=11 // pred_check
          %p135 = pneg %p73
        $region14: #{tpu_custom_call.1} parent=11 // pred_check_branch
          %137 = sbr.rel (%p135) target = $region16
        $region15: #{tpu_custom_call.1} parent=11 // pred_region
          _
        $region16: #{tpu_custom_call.1} parent=11 // pred_fallthru
          _
        // Predicated region
        $region17: #{tpu_custom_call.1} parent=11 // pred_check
          %p138 = pneg %p94
        $region18: #{tpu_custom_call.1} parent=11 // pred_check_branch
          %140 = sbr.rel (%p138) target = $region20
        $region19: #{tpu_custom_call.1} parent=11 // pred_region
          _
        $region20: #{tpu_custom_call.1} parent=11 // pred_fallthru
          _
      $region12: #{tpu_custom_call.1} parent=5 // pred_fallthru
        _
      %p141 = scmp.lt.s32.totalorder %s12, 8
      // Predicated region
      $region21: #{tpu_custom_call.1} parent=5 // pred_check
        %p142 = pneg %p141
      $region22: #{tpu_custom_call.1} parent=5 // pred_check_branch
        %144 = sbr.rel (%p142) target = $region24
      $region23: #{tpu_custom_call.1} parent=5 // pred_region
        // Predicated region
        $region25: #{tpu_custom_call.1} parent=23 // pred_check
          %p145 = pneg %p46
        $region26: #{tpu_custom_call.1} parent=23 // pred_check_branch
          %147 = sbr.rel (%p145) target = $region28
        $region27: #{tpu_custom_call.1} parent=23 // pred_region
          %s148 = sand.u32 %s36, 1
          %s149 = sand.u32 %s36, 1
          %s150 = smul.addr %s149, 128
          %s151 = scalar_lea.vmem [#allocation4], %s150
          %s152 = smul.u32 8, %s20
          %s153 = smul.addr %s19, 64
          %s154 = sadd.s32 %s152, %s153
          %s155 = smul.addr %s154, 8
          %s156 = scalar_lea.vmem %s0, %s155
          // Predicated region
          $region29: #{tpu_custom_call.1} parent=27 // pred_check
            _
          $region30: #{tpu_custom_call.1} parent=27 // pred_check_branch
            %158 = sbr.rel (0) target = $region32
          $region31: #{tpu_custom_call.1} parent=27 // pred_region
            // Predicated region
            $region33: #{tpu_custom_call.1} parent=31 // pred_check
              _
            $region34: #{tpu_custom_call.1} parent=31 // pred_check_branch
              %160 = sbr.rel (0) target = $region36
            $region35: #{tpu_custom_call.1} parent=31 // pred_region
              loop: start=0, step=1, limit=1
              $region37: #{tpu_custom_call.1} parent=35 // loop_pre_header
                _
              $region38: #{tpu_custom_call.1} parent=35 // loop_header
                %s162 = sphi 0, %s166
                %p163 = scmp.ge.s32.totalorder %s162, 1
                %s167 = sphi %s156, %s156
                %s168 = sphi %s151, %s151
              $region39: #{tpu_custom_call.1} parent=35 // loop_header_branch
                %165 = sbr.rel (%p163) target = $region43
              $region40: #{tpu_custom_call.1} parent=35 // loop_body
                %v169 = vld [vmem:[%s167] sm:$0xff]
                %170 = vst [vmem:[%s168] sm:$0xff] %v169
                %v171 = vld [vmem:[%s167 + $0x8] sm:$0xff]
                %172 = vst [vmem:[%s168 + $0x8] sm:$0xff] %v171
                %v173 = vld [vmem:[%s167 + $0x10] sm:$0xff]
                %174 = vst [vmem:[%s168 + $0x10] sm:$0xff] %v173
                %v175 = vld [vmem:[%s167 + $0x18] sm:$0xff]
                %176 = vst [vmem:[%s168 + $0x18] sm:$0xff] %v175
                %v177 = vld [vmem:[%s167 + $0x20] sm:$0xff]
                %178 = vst [vmem:[%s168 + $0x20] sm:$0xff] %v177
                %v179 = vld [vmem:[%s167 + $0x28] sm:$0xff]
                %180 = vst [vmem:[%s168 + $0x28] sm:$0xff] %v179
                %v181 = vld [vmem:[%s167 + $0x30] sm:$0xff]
                %182 = vst [vmem:[%s168 + $0x30] sm:$0xff] %v181
                %v183 = vld [vmem:[%s167 + $0x38] sm:$0xff]
                %184 = vst [vmem:[%s168 + $0x38] sm:$0xff] %v183
                %v185 = vld [vmem:[%s167 + $0x100] sm:$0xff]
                %186 = vst [vmem:[%s168 + $0x40] sm:$0xff] %v185
                %v187 = vld [vmem:[%s167 + $0x108] sm:$0xff]
                %188 = vst [vmem:[%s168 + $0x48] sm:$0xff] %v187
                %v189 = vld [vmem:[%s167 + $0x110] sm:$0xff]
                %190 = vst [vmem:[%s168 + $0x50] sm:$0xff] %v189
                %v191 = vld [vmem:[%s167 + $0x118] sm:$0xff]
                %192 = vst [vmem:[%s168 + $0x58] sm:$0xff] %v191
                %v193 = vld [vmem:[%s167 + $0x120] sm:$0xff]
                %194 = vst [vmem:[%s168 + $0x60] sm:$0xff] %v193
                %v195 = vld [vmem:[%s167 + $0x128] sm:$0xff]
                %196 = vst [vmem:[%s168 + $0x68] sm:$0xff] %v195
                %v197 = vld [vmem:[%s167 + $0x130] sm:$0xff]
                %198 = vst [vmem:[%s168 + $0x70] sm:$0xff] %v197
                %v199 = vld [vmem:[%s167 + $0x138] sm:$0xff]
                %200 = vst [vmem:[%s168 + $0x78] sm:$0xff] %v199
              $region41: #{tpu_custom_call.1} parent=35 // loop_footer
                %s166 = sadd.s32 1, %s162
              $region42: #{tpu_custom_call.1} parent=35 // loop_footer_branch
                %161 = sbr.rel target = $region38
              $region43: #{tpu_custom_call.1} parent=35 // loop_exit
                _
            $region36: #{tpu_custom_call.1} parent=31 // pred_fallthru
              _
            // Predicated region
            $region44: #{tpu_custom_call.1} parent=31 // pred_check
              _
            $region45: #{tpu_custom_call.1} parent=31 // pred_check_branch
              %202 = sbr.rel target = $region47
            $region46: #{tpu_custom_call.1} parent=31 // pred_region
              _
            $region47: #{tpu_custom_call.1} parent=31 // pred_fallthru
              _
          $region32: #{tpu_custom_call.1} parent=27 // pred_fallthru
            _
          %203 = vnop
        $region28: #{tpu_custom_call.1} parent=23 // pred_fallthru
          _
      $region24: #{tpu_custom_call.1} parent=5 // pred_fallthru
        _
      %p204 = scmp.le.s32.totalorder 1, %s12
      %p205 = scmp.lt.s32.totalorder %s12, 9
      %p206 = pnand %p204, %p205
      %p207 = pneg %p206
      // Predicated region
      $region48: #{tpu_custom_call.1} parent=5 // pred_check
        _
      $region49: #{tpu_custom_call.1} parent=5 // pred_check_branch
        %209 = sbr.rel (%p206) target = $region51
      $region50: #{tpu_custom_call.1} parent=5 // pred_region
        %s210 = ssub.s32 %s12, 1
        %s211 = sand.u32 %s39, 1
        %s212 = sand.u32 %s39, 1
        %s213 = smul.addr %s212, 128
        %s214 = scalar_lea.vmem [#allocation4], %s213
        // Predicated region
        $region52: #{tpu_custom_call.1} parent=50 // pred_check
          %p215 = pneg %p52
        $region53: #{tpu_custom_call.1} parent=50 // pred_check_branch
          %217 = sbr.rel (%p215) target = $region55
        $region54: #{tpu_custom_call.1} parent=50 // pred_region
          _
        $region55: #{tpu_custom_call.1} parent=50 // pred_fallthru
          _
        %s218 = sand.u32 %s39, 1
        %s219 = sand.u32 %s39, 1
        %s220 = smul.addr %s219, 128
        %s221 = scalar_lea.vmem [#allocation4], %s220
        %p222 = pneg %p52
        %p223 = pneg %p49
        %p224 = pneg %p73
        %p225 = pneg %p70
        %p226 = pneg %p94
        %p227 = pneg %p91
        %p228 = pneg %p120
        %p229 = pneg %p117
        %s230 = sand.u32 %s107, 1
        %s231 = scalar_lea.sflag [#allocation6], %s230
        %s232 = sand.u32 %s107, 1
        %s233 = scalar_lea.vmem [#allocation5], %s232
        %s234 = smul.u32 8, %s22
        %p235 = scmp.eq.s32.totalorder %s22, 0
        // Predicated region
        $region56: #{tpu_custom_call.1} parent=50 // pred_check
          %p236 = pneg %p235
        $region57: #{tpu_custom_call.1} parent=50 // pred_check_branch
          %238 = sbr.rel (%p236) target = $region59
        $region58: #{tpu_custom_call.1} parent=50 // pred_region
          %239 = vst [vmem:[#allocation2] sm:$0xff] 0.0
          %240 = vst [vmem:[#allocation2 + $0x8] sm:$0xff] 0.0
          %241 = vst [vmem:[#allocation2 + $0x10] sm:$0xff] 0.0
          %242 = vst [vmem:[#allocation2 + $0x18] sm:$0xff] 0.0
          %243 = vst [vmem:[#allocation2 + $0x20] sm:$0xf] 0.0
          %244 = vst [vmem:[#allocation2 + $0x28] sm:$0xf] 0.0
          %245 = vst [vmem:[#allocation2 + $0x30] sm:$0xf] 0.0
          %246 = vst [vmem:[#allocation2 + $0x38] sm:$0xf] 0.0
          %247 = vst [vmem:[#allocation3] sm:$0xff] -inf
          %248 = vst [vmem:[#allocation3 + $0x8] sm:$0xff] -inf
          %249 = vst [vmem:[#allocation3 + $0x10] sm:$0xff] -inf
          %250 = vst [vmem:[#allocation3 + $0x18] sm:$0xff] -inf
          %251 = vst [vmem:[#allocation3 + $0x20] sm:$0xf] -inf
          %252 = vst [vmem:[#allocation3 + $0x28] sm:$0xf] -inf
          %253 = vst [vmem:[#allocation3 + $0x30] sm:$0xf] -inf
          %254 = vst [vmem:[#allocation3 + $0x38] sm:$0xf] -inf
        $region59: #{tpu_custom_call.1} parent=50 // pred_fallthru
          _
        %v255 = vld [vmem:[#allocation2] sm:$0xff]
        %v256 = vld [vmem:[#allocation2 + $0x8] sm:$0xff]
        %v257 = vld [vmem:[#allocation2 + $0x10] sm:$0xff]
        %v258 = vld [vmem:[#allocation2 + $0x18] sm:$0xff]
        %v259 = vld [vmem:[#allocation2 + $0x20] sm:$0xf]
        %v260 = vld [vmem:[#allocation2 + $0x28] sm:$0xf]
        %v261 = vld [vmem:[#allocation2 + $0x30] sm:$0xf]
        %v262 = vld [vmem:[#allocation2 + $0x38] sm:$0xf]
        %v263 = vld [vmem:[#allocation3] sm:$0xff]
        %v264 = vld [vmem:[#allocation3 + $0x8] sm:$0xff]
        %v265 = vld [vmem:[#allocation3 + $0x10] sm:$0xff]
        %v266 = vld [vmem:[#allocation3 + $0x18] sm:$0xff]
        %v267 = vld [vmem:[#allocation3 + $0x20] sm:$0xf]
        %v268 = vld [vmem:[#allocation3 + $0x28] sm:$0xf]
        %v269 = vld [vmem:[#allocation3 + $0x30] sm:$0xf]
        %v270 = vld [vmem:[#allocation3 + $0x38] sm:$0xf]
        %v271 = vld [vmem:[%s214] sm:$0xff]
        %v272 = vld [vmem:[%s214 + $0x8] sm:$0xff]
        %v273 = vld [vmem:[%s214 + $0x10] sm:$0xff]
        %v274 = vld [vmem:[%s214 + $0x18] sm:$0xff]
        %v275 = vld [vmem:[%s214 + $0x40] sm:$0xf]
        %v276 = vld [vmem:[%s214 + $0x48] sm:$0xf]
        %v277 = vld [vmem:[%s214 + $0x50] sm:$0xf]
        %v278 = vld [vmem:[%s214 + $0x58] sm:$0xf]
        %v279 = vadd.f32 %v255, %v271
        %v280 = vadd.f32 %v256, %v272
        %v281 = vadd.f32 %v257, %v273
        %v282 = vadd.f32 %v258, %v274
        %v283 = vadd.f32 %v259, %v275
        %v284 = vadd.f32 %v260, %v276
        %v285 = vadd.f32 %v261, %v277
        %v286 = vadd.f32 %v262, %v278
        %v287 = vmax.f32 %v263, %v271
        %v288 = vmax.f32 %v264, %v272
        %v289 = vmax.f32 %v265, %v273
        %v290 = vmax.f32 %v266, %v274
        %v291 = vmax.f32 %v267, %v275
        %v292 = vmax.f32 %v268, %v276
        %v293 = vmax.f32 %v269, %v277
        %v294 = vmax.f32 %v270, %v278
        %s295 = scalar_lea.vmem %s214, 32 [#allocation4]
        %v296 = vld [vmem:[%s295] sm:$0xff]
        %v297 = vld [vmem:[%s295 + $0x8] sm:$0xff]
        %v298 = vld [vmem:[%s295 + $0x10] sm:$0xff]
        %v299 = vld [vmem:[%s295 + $0x18] sm:$0xff]
        %v300 = vld [vmem:[%s295 + $0x40] sm:$0xf]
        %v301 = vld [vmem:[%s295 + $0x48] sm:$0xf]
        %v302 = vld [vmem:[%s295 + $0x50] sm:$0xf]
        %v303 = vld [vmem:[%s295 + $0x58] sm:$0xf]
        %v304 = vadd.f32 %v279, %v296
        %v305 = vadd.f32 %v280, %v297
        %v306 = vadd.f32 %v281, %v298
        %v307 = vadd.f32 %v282, %v299
        %v308 = vadd.f32 %v283, %v300
        %v309 = vadd.f32 %v284, %v301
        %v310 = vadd.f32 %v285, %v302
        %v311 = vadd.f32 %v286, %v303
        %v312 = vmax.f32 %v287, %v296
        %v313 = vmax.f32 %v288, %v297
        %v314 = vmax.f32 %v289, %v298
        %v315 = vmax.f32 %v290, %v299
        %v316 = vmax.f32 %v291, %v300
        %v317 = vmax.f32 %v292, %v301
        %v318 = vmax.f32 %v293, %v302
        %v319 = vmax.f32 %v294, %v303
        %320 = vst [vmem:[#allocation2] sm:$0xff] %v304
        %321 = vst [vmem:[#allocation2 + $0x8] sm:$0xff] %v305
        %322 = vst [vmem:[#allocation2 + $0x10] sm:$0xff] %v306
        %323 = vst [vmem:[#allocation2 + $0x18] sm:$0xff] %v307
        %324 = vst [vmem:[#allocation2 + $0x20] sm:$0xf] %v308
        %325 = vst [vmem:[#allocation2 + $0x28] sm:$0xf] %v309
        %326 = vst [vmem:[#allocation2 + $0x30] sm:$0xf] %v310
        %327 = vst [vmem:[#allocation2 + $0x38] sm:$0xf] %v311
        %328 = vst [vmem:[#allocation3] sm:$0xff] %v312
        %329 = vst [vmem:[#allocation3 + $0x8] sm:$0xff] %v313
        %330 = vst [vmem:[#allocation3 + $0x10] sm:$0xff] %v314
        %331 = vst [vmem:[#allocation3 + $0x18] sm:$0xff] %v315
        %332 = vst [vmem:[#allocation3 + $0x20] sm:$0xf] %v316
        %333 = vst [vmem:[#allocation3 + $0x28] sm:$0xf] %v317
        %334 = vst [vmem:[#allocation3 + $0x30] sm:$0xf] %v318
        %335 = vst [vmem:[#allocation3 + $0x38] sm:$0xf] %v319
        %p336 = scmp.eq.s32.totalorder %s22, 3
        // Predicated region
        $region60: #{tpu_custom_call.1} parent=50 // pred_check
          %p337 = pneg %p336
        $region61: #{tpu_custom_call.1} parent=50 // pred_check_branch
          %339 = sbr.rel (%p337) target = $region63
        $region62: #{tpu_custom_call.1} parent=50 // pred_region
          %v340 = vld [vmem:[#allocation2] sm:$0xff]
          %v341 = vld [vmem:[#allocation2 + $0x8] sm:$0xff]
          %v342 = vld [vmem:[#allocation2 + $0x10] sm:$0xff]
          %v343 = vld [vmem:[#allocation2 + $0x18] sm:$0xff]
          %v344 = vld [vmem:[#allocation2 + $0x20] sm:$0xf]
          %v345 = vld [vmem:[#allocation2 + $0x28] sm:$0xf]
          %v346 = vld [vmem:[#allocation2 + $0x30] sm:$0xf]
          %v347 = vld [vmem:[#allocation2 + $0x38] sm:$0xf]
          %v348 = vadd.f32 %v340, %v341
          %v349 = vadd.f32 %v348, %v342
          %v350 = vadd.f32 %v349, %v343
          %351 = vadd.xlane.f32.xlu0 %v350
          %v352 = vpop.xlane.xlu0 %351
          %vm353 = vcmask 1043456
          %v354 = vsel %vm353, %v344, 0.0
          %v355 = vsel %vm353, %v345, 0.0
          %v356 = vadd.f32 %v354, %v355
          %v357 = vsel %vm353, %v346, 0.0
          %v358 = vadd.f32 %v356, %v357
          %v359 = vsel %vm353, %v347, 0.0
          %v360 = vadd.f32 %v358, %v359
          %361 = vadd.xlane.f32.xlu0 %v360
          %v362 = vpop.xlane.xlu0 %361
          %v363 = vmul.f32 %v352, 0.00024414063
          %v364 = vmul.f32 %v362, 0.00024414063
          %v365 = vld [vmem:[#allocation3] sm:$0xff]
          %v366 = vld [vmem:[#allocation3 + $0x8] sm:$0xff]
          %v367 = vld [vmem:[#allocation3 + $0x10] sm:$0xff]
          %v368 = vld [vmem:[#allocation3 + $0x18] sm:$0xff]
          %v369 = vld [vmem:[#allocation3 + $0x20] sm:$0xf]
          %v370 = vld [vmem:[#allocation3 + $0x28] sm:$0xf]
          %v371 = vld [vmem:[#allocation3 + $0x30] sm:$0xf]
          %v372 = vld [vmem:[#allocation3 + $0x38] sm:$0xf]
          %v373 = vmax.f32 %v365, %v367
          %v374 = vmax.f32 %v366, %v368
          %v375 = vmax.f32 %v373, %v374
          %376 = vmax.xlane.f32.xlu0 %v375
          %v377 = vpop.xlane.xlu0 %376
          %v378 = vsel %vm353, %v369, -inf
          %v379 = vsel %vm353, %v370, -inf
          %v380 = vsel %vm353, %v371, -inf
          %v381 = vmax.f32 %v378, %v380
          %v382 = vsel %vm353, %v372, -inf
          %v383 = vmax.f32 %v379, %v382
          %v384 = vmax.f32 %v381, %v383
          %385 = vmax.xlane.f32.xlu0 %v384
          %v386 = vpop.xlane.xlu0 %385
          %v389 = vlaneseq
          %v390 = vand.u32 %v389, 127
          %v391 = vperm.slane %v363, %v390
          %v392 = vadd.s32 %v390, 4294967288
          %v393 = vperm.slane %v364, %v392
          %vm394 = vcmask 130112
          %v395 = vsel %vm394, %v393, %v391
          %v399 = vperm.slane %v377, %v390
          %v400 = vperm.slane %v386, %v392
          %v401 = vsel %vm394, %v400, %v399
          %vm403 = vcmask 1040384
          %v404 = vsel %vm403, %v395, %v401
          %v405 = vld [vmem:[%s1] sm:$0xff]
          %v406 = vld [vmem:[%s1 + $0x8] sm:$0xf]
          %v407 = vld [vmem:[%s2] sm:$0xf]
          %vm408 = vcmask 97280
          %v410 = vsel %vm408, %v404, 0
          %v413 = vsel %vm353, %v406, 0
          %415 = vmatpush.msra.mxu0 0.0
          %416 = vmatpush.msra.mxu0 0.0
          %417 = vmatpush.msra.mxu0 0.0
          %418 = vmatpush.msra.mxu0 0.0
          %419 = vmatpush.msra.mxu0 0.0
          %420 = vmatpush.msra.mxu0 0.0
          %421 = vmatpush.msra.mxu0 0.0
          %422 = vmatpush.msra.mxu0 0.0
          %423 = vmatpush.msra.mxu0 0.0
          %424 = vmatpush.msra.mxu0 0.0
          %425 = vmatpush.msra.mxu0 0.0
          %426 = vmatpush.msra.mxu0 0.0
          %427 = vmatpush.msra.mxu0 0.0
          %428 = vmatpush.msra.mxu0 0.0
          %429 = vmatpush.msra.mxu0 %v413
          %430 = vmatpush.msra.mxu0 %v405
          %431 = vmatmul.f32.gmra.mxu0 %v410
          %v432 = vpop.f32.mrf.mxu0
          %v433 = vadd.f32 0.0, %v432
          %434 = vdwg.mxu0
          %v435 = vmax.f32 %v433, 0.0
          %vm436 = vcmask 31744
          %v438 = vsel %vm436, %v435, 0
          %v441 = vsel %vm353, %v407, 0
          %443 = vmatpush.msra.mxu0 0.0
          %444 = vmatpush.msra.mxu0 0.0
          %445 = vmatpush.msra.mxu0 0.0
          %446 = vmatpush.msra.mxu0 0.0
          %447 = vmatpush.msra.mxu0 0.0
          %448 = vmatpush.msra.mxu0 0.0
          %449 = vmatpush.msra.mxu0 0.0
          %450 = vmatpush.msra.mxu0 0.0
          %451 = vmatpush.msra.mxu0 0.0
          %452 = vmatpush.msra.mxu0 0.0
          %453 = vmatpush.msra.mxu0 0.0
          %454 = vmatpush.msra.mxu0 0.0
          %455 = vmatpush.msra.mxu0 0.0
          %456 = vmatpush.msra.mxu0 0.0
          %457 = vmatpush.msra.mxu0 0.0
          %458 = vmatpush.msra.mxu0 %v441
          %459 = vmatmul.f32.gmra.mxu0 %v438
          %v460 = vpop.f32.mrf.mxu0
          %v461 = vadd.f32 0.0, %v460
          %462 = vdwg.mxu0
          %v464 = vrot.slane %v461, 1
          %v466 = vadd.f32 %v461, %v464
          %v467 = vxor.u32 %v466, 2147483648
          %v468 = vmul.f32 %v467, 1.442695
          %v469 = vpow.pop %v468
          %v470 = vadd.f32 %v469, 1.0
          %v471 = vrcp.pop %v470
          %v472 = vmul.f32 %v470, %v471
          %v473 = vsub.f32 1.0, %v472
          %v474 = vmul.f32 %v471, %v473
          %v475 = vadd.f32 %v471, %v474
          %vm476 = vweird.f32 %v470
          %vm477 = vweird.f32 %v471
          %vm478 = vmor %vm476, %vm477
          %v479 = vsel %vm478, %v471, %v475
          %v480 = vand.u32 2147483647, %v470
          %vm481 = vcmp.eq.f32.partialorder %v480, 8.507059e+37
          %v482 = vand.u32 %v470, 2147483648
          %v483 = vor.u32 1.1754944e-38, %v482
          %v484 = vsel %vm481, %v483, %v479
          %v485 = vmul.f32 1.0, %v484
          %vm486 = vcmask 90112
          %487 = vst.msk [vmem:[%s233] sm:$0x1] %vm486, %v485
        $region63: #{tpu_custom_call.1} parent=50 // pred_fallthru
          _
        %s488 = sand.u32 %s107, 1
        %s489 = scalar_lea.sflag [#allocation6], %s488
        %s490 = sand.u32 %s107, 1
        %s491 = scalar_lea.vmem [#allocation5], %s490
        // Predicated region
        $region64: #{tpu_custom_call.1} parent=50 // pred_check
          %p492 = pneg %p117
        $region65: #{tpu_custom_call.1} parent=50 // pred_check_branch
          %494 = sbr.rel (%p492) target = $region67
        $region66: #{tpu_custom_call.1} parent=50 // pred_region
          %496 = vsyncadd %s489, 0
          %s497 = scalar_lea.hbm %s3, %s21
          %s499 = sshll.u32 %s491, 4
          %s500 = int_to_ptr.vmem [resolvable:$true] %s499
          %s501 = sshll.u32 %s497, 4
          %s502 = int_to_ptr.hbm [resolvable:$true] %s501
          %504 = dma.vmem_to_hbm [thread:$0]  %s500, 16, %s502, %s489
        $region67: #{tpu_custom_call.1} parent=50 // pred_fallthru
          _
      $region51: #{tpu_custom_call.1} parent=5 // pred_fallthru
        _
      %p505 = scmp.le.s32.totalorder 2, %s12
      // Predicated region
      $region68: #{tpu_custom_call.1} parent=5 // pred_check
        %p506 = pneg %p505
      $region69: #{tpu_custom_call.1} parent=5 // pred_check_branch
        %508 = sbr.rel (%p506) target = $region71
      $region70: #{tpu_custom_call.1} parent=5 // pred_region
        %s509 = ssub.s32 %s12, 2
        // Predicated region
        $region72: #{tpu_custom_call.1} parent=70 // pred_check
          %p510 = pneg %p123
        $region73: #{tpu_custom_call.1} parent=70 // pred_check_branch
          %512 = sbr.rel (%p510) target = $region75
        $region74: #{tpu_custom_call.1} parent=70 // pred_region
          %s513 = sand.u32 %s108, 1
          %s514 = scalar_lea.sflag [#allocation6], %s513
          %s515 = sand.u32 %s108, 1
          %s516 = scalar_lea.vmem [#allocation5], %s515
          %518 = dma.done %s514, 16
        $region75: #{tpu_custom_call.1} parent=70 // pred_fallthru
          _
      $region71: #{tpu_custom_call.1} parent=5 // pred_fallthru
        _
    $region6: #{tpu_custom_call.1} parent=1 // loop_footer
      %s16 = sadd.s32 1, %s12
    $region7: #{tpu_custom_call.1} parent=1 // loop_footer_branch
      %11 = sbr.rel target = $region3
    $region8: #{tpu_custom_call.1} parent=1 // loop_exit
      _
    %519 = vsyncpa [#allocation6], 1
    %s520 = scalar_lea.sflag [#allocation6], 1
    %521 = vsyncpa %s520, 1

</llo_original>
